<compile_context>
chip_gen: v5e
topology: v5e:2x2
jax: 0.10.0
libtpu: 0.0.40
codegen_flags: <defaults>
</compile_context>

<pallas_src>
import math

import jax
import jax.numpy as jnp
from jax.experimental import pallas as pl
from jax.experimental.pallas import tpu as pltpu

LANES = 128
SUBLANES = 8
SMOOTH_FACTOR = 1.0  # matches DiceLoss(smooth_factor=1)


def _dice_partial_kernel(scores_ref, targets_ref, inter_ref, union_ref):
    # Output blocks are resident across the (arbitrary) tile axis: they ARE the
    # per-core accumulators. Initialize on the first tile of each core.
    @pl.when(pl.program_id(1) == 0)
    def _init():
        inter_ref[...] = jnp.zeros_like(inter_ref)
        union_ref[...] = jnp.zeros_like(union_ref)

    x = scores_ref[...].astype(jnp.float32)
    t = targets_ref[...].astype(jnp.float32)

    # Single-transcendental sigmoid: sigmoid(x) = 0.5 * tanh(0.5 * x) + 0.5
    preds = 0.5 * jnp.tanh(0.5 * x) + 0.5

    br, lanes = x.shape
    inter = (preds * t).reshape(br // SUBLANES, SUBLANES, lanes)
    union = (preds + t).reshape(br // SUBLANES, SUBLANES, lanes)

    # Fold the whole block into one vreg-shaped (8,128) partial using pure VPU
    # adds (no cross-lane reduce per step); the XLU reduction happens once in
    # the wrapper after the grid finishes.
    inter_ref[...] += jnp.sum(inter, axis=0)
    union_ref[...] += jnp.sum(union, axis=0)


def dice_loss(scores_matrix, targets_matrix, *, smooth_factor=SMOOTH_FACTOR,
              block_rows=2048, num_cores=2):
    """Pallas DiceLoss forward. Inputs: 3D arrays (any float dtype). Returns f32 scalar."""
    assert scores_matrix.shape == targets_matrix.shape
    assert scores_matrix.ndim == 3

    n = math.prod(scores_matrix.shape)

    # Lane-dense 2D tiling of the flattened tensor: (rows_padded, 128).
    rows_needed = pl.cdiv(n, LANES)
    rows_needed_aligned = pl.cdiv(rows_needed, SUBLANES) * SUBLANES
    block_rows = max(SUBLANES, (block_rows // SUBLANES) * SUBLANES)
    block_rows = min(block_rows, rows_needed_aligned)

    tiles_total = pl.cdiv(rows_needed_aligned, block_rows)
    num_cores = max(1, min(num_cores, tiles_total))   # megacore split (v7x)
    tiles_per_core = pl.cdiv(tiles_total, num_cores)

    rows_padded = num_cores * tiles_per_core * block_rows
    n_padded = rows_padded * LANES
    n_pad = n_padded - n

    def to_tiles(x):
        flat = x.reshape(-1)
        if n_pad:
            flat = jnp.pad(flat, (0, n_pad))
        return flat.reshape(rows_padded, LANES)

    # Keep the native dtype in HBM (e.g. bf16 scores); cast to f32 in-kernel.
    s2d = to_tiles(scores_matrix)
    t2d = to_tiles(targets_matrix)

    cost = pl.CostEstimate(
        flops=6 * n_padded,
        transcendentals=n_padded,
        bytes_accessed=n_padded * (s2d.dtype.itemsize + t2d.dtype.itemsize)
        + 2 * num_cores * SUBLANES * LANES * 4,
    )

    inter_p, union_p = pl.pallas_call(
        _dice_partial_kernel,
        out_shape=(
            jax.ShapeDtypeStruct((num_cores * SUBLANES, LANES), jnp.float32),
            jax.ShapeDtypeStruct((num_cores * SUBLANES, LANES), jnp.float32),
        ),
        grid_spec=pltpu.PrefetchScalarGridSpec(
            num_scalar_prefetch=0,
            grid=(num_cores, tiles_per_core),
            in_specs=[
                pl.BlockSpec((block_rows, LANES),
                             lambda c, t: (c * tiles_per_core + t, 0)),
                pl.BlockSpec((block_rows, LANES),
                             lambda c, t: (c * tiles_per_core + t, 0)),
            ],
            out_specs=(
                pl.BlockSpec((SUBLANES, LANES), lambda c, t: (c, 0)),
                pl.BlockSpec((SUBLANES, LANES), lambda c, t: (c, 0)),
            ),
        ),
        compiler_params=pltpu.CompilerParams(
            dimension_semantics=("parallel", "arbitrary"),
        ),
        cost_estimate=cost,
    )(s2d, t2d)

    inter_raw = jnp.sum(inter_p, dtype=jnp.float32)
    union_raw = jnp.sum(union_p, dtype=jnp.float32)

    # Exact padding correction: padded elements have scores=0, targets=0, so
    # preds = 0.5 exactly -> inter contribution 0, union contribution 0.5 each.
    union_raw = union_raw - 0.5 * n_pad

    # Smoothing hoisted out of the kernel: the reference adds smooth/2 (resp.
    # smooth) to EVERY element before summing, i.e. +n*smooth/2 / +n*smooth.
    inter_total = inter_raw + n * (smooth_factor / 2.0)
    union_total = union_raw + n * smooth_factor
    return 1.0 - 2.0 * inter_total / union_total


def dice_loss_ref(scores_matrix, targets_matrix, smooth_factor=SMOOTH_FACTOR):
    preds = jax.nn.sigmoid(scores_matrix.astype(jnp.float32))
    t = targets_matrix.astype(jnp.float32)
    inter = preds * t + smooth_factor / 2.0
    union = preds + t + smooth_factor
    return 1.0 - 2.0 * jnp.sum(inter) / jnp.sum(union)


if __name__ == "__main__":
    key = jax.random.PRNGKey(0)
    k1, k2, k3, k4 = jax.random.split(key, 4)

    # Case 1: lane-aligned 3D input.
    B, H, W = 2, 16, 128
    scores = jax.random.normal(k1, (B, H, W), dtype=jnp.float32)
    targets = (jax.random.uniform(k2, (B, H, W)) > 0.5).astype(jnp.float32)
    loss = jax.block_until_ready(dice_loss(scores, targets))
    ref = jax.block_until_ready(dice_loss_ref(scores, targets))
    assert jnp.allclose(loss, ref, atol=1e-5, rtol=1e-5), (loss, ref)

    # Case 2: non-multiple-of-128 element count -> exercises padding correction.
    B2, H2, W2 = 2, 16, 100
    scores2 = jax.random.normal(k3, (B2, H2, W2), dtype=jnp.float32)
    targets2 = (jax.random.uniform(k4, (B2, H2, W2)) > 0.5).astype(jnp.float32)
    loss2 = jax.block_until_ready(dice_loss(scores2, targets2))
    ref2 = jax.block_until_ready(dice_loss_ref(scores2, targets2))
    assert jnp.allclose(loss2, ref2, atol=1e-5, rtol=1e-5), (loss2, ref2)

    print("KERNEL_OK")
</pallas_src>

<mosaic_0001>
module attributes {stable_mosaic.version = 11 : i64} {
  func.func @_dice_partial_kernel(%arg0: i32, %arg1: i32, %arg2: memref<32x128xf32, #tpu.memory_space<vmem>>, %arg3: memref<32x128xf32, #tpu.memory_space<vmem>>, %arg4: memref<8x128xf32, #tpu.memory_space<vmem>>, %arg5: memref<8x128xf32, #tpu.memory_space<vmem>>) attributes {dimension_semantics = [#tpu.dimension_semantics<parallel>, #tpu.dimension_semantics<arbitrary>], iteration_bounds = array<i64: 1, 1>, scalar_prefetch = 0 : i64, scratch_operands = 0 : i64, tpu.core_type = #tpu.core_type<tc>, window_params = [{transform_indices = @transform_0, window_bounds = array<i64: 32, 128>}, {transform_indices = @transform_1, window_bounds = array<i64: 32, 128>}, {transform_indices = @transform_2, window_bounds = array<i64: 8, 128>}, {transform_indices = @transform_3, window_bounds = array<i64: 8, 128>}]} {
    %c0_i32 = arith.constant 0 : i32
    %0 = arith.cmpi eq, %arg1, %c0_i32 : i32
    %1 = arith.extui %0 : i1 to i32
    %c0_i32_0 = arith.constant 0 : i32
    %2 = arith.cmpi ne, %1, %c0_i32_0 : i32
    scf.if %2 {
      %cst_16 = arith.constant 0.000000e+00 : f32
      %24 = vector.broadcast %cst_16 : f32 to vector<8x128xf32>
      %c0_17 = arith.constant 0 : index
      %c0_18 = arith.constant 0 : index
      %25 = vector.load %arg4[%c0_17, %c0_18] : memref<8x128xf32, #tpu.memory_space<vmem>>, vector<8x128xf32>
      tpu.vector_store %arg4[%c0_17, %c0_18], %24 {strides = array<i32>} : memref<8x128xf32, #tpu.memory_space<vmem>>, vector<8x128xf32>,
      %cst_19 = arith.constant 0.000000e+00 : f32
      %26 = vector.broadcast %cst_19 : f32 to vector<8x128xf32>
      %c0_20 = arith.constant 0 : index
      %c0_21 = arith.constant 0 : index
      %27 = vector.load %arg5[%c0_20, %c0_21] : memref<8x128xf32, #tpu.memory_space<vmem>>, vector<8x128xf32>
      tpu.vector_store %arg5[%c0_20, %c0_21], %26 {strides = array<i32>} : memref<8x128xf32, #tpu.memory_space<vmem>>, vector<8x128xf32>,
    } else {
    }
    %c0 = arith.constant 0 : index
    %c0_1 = arith.constant 0 : index
    %3 = vector.load %arg2[%c0, %c0_1] : memref<32x128xf32, #tpu.memory_space<vmem>>, vector<32x128xf32>
    %c0_2 = arith.constant 0 : index
    %c0_3 = arith.constant 0 : index
    %4 = vector.load %arg3[%c0_2, %c0_3] : memref<32x128xf32, #tpu.memory_space<vmem>>, vector<32x128xf32>
    %cst = arith.constant 5.000000e-01 : f32
    %5 = vector.broadcast %cst : f32 to vector<32x128xf32>
    %6 = arith.mulf %5, %3 : vector<32x128xf32>
    %7 = math.tanh %6 : vector<32x128xf32>
    %cst_4 = arith.constant 5.000000e-01 : f32
    %8 = vector.broadcast %cst_4 : f32 to vector<32x128xf32>
    %9 = arith.mulf %8, %7 : vector<32x128xf32>
    %cst_5 = arith.constant 5.000000e-01 : f32
    %10 = vector.broadcast %cst_5 : f32 to vector<32x128xf32>
    %11 = arith.addf %9, %10 : vector<32x128xf32>
    %12 = arith.mulf %11, %4 : vector<32x128xf32>
    %13 = vector.shape_cast %12 : vector<32x128xf32> to vector<4x8x128xf32>
    %14 = arith.addf %11, %4 : vector<32x128xf32>
    %15 = vector.shape_cast %14 : vector<32x128xf32> to vector<4x8x128xf32>
    %c0_6 = arith.constant 0 : index
    %c0_7 = arith.constant 0 : index
    %16 = vector.load %arg4[%c0_6, %c0_7] : memref<8x128xf32, #tpu.memory_space<vmem>>, vector<8x128xf32>
    %cst_8 = arith.constant dense<0.000000e+00> : vector<8x128xf32>
    %17 = vector.multi_reduction <add>, %13, %cst_8 [0] : vector<4x8x128xf32> to vector<8x128xf32>
    %18 = arith.addf %16, %17 : vector<8x128xf32>
    %c0_9 = arith.constant 0 : index
    %c0_10 = arith.constant 0 : index
    %19 = vector.load %arg4[%c0_9, %c0_10] : memref<8x128xf32, #tpu.memory_space<vmem>>, vector<8x128xf32>
    tpu.vector_store %arg4[%c0_9, %c0_10], %18 {strides = array<i32>} : memref<8x128xf32, #tpu.memory_space<vmem>>, vector<8x128xf32>,
    %c0_11 = arith.constant 0 : index
    %c0_12 = arith.constant 0 : index
    %20 = vector.load %arg5[%c0_11, %c0_12] : memref<8x128xf32, #tpu.memory_space<vmem>>, vector<8x128xf32>
    %cst_13 = arith.constant dense<0.000000e+00> : vector<8x128xf32>
    %21 = vector.multi_reduction <add>, %15, %cst_13 [0] : vector<4x8x128xf32> to vector<8x128xf32>
    %22 = arith.addf %20, %21 : vector<8x128xf32>
    %c0_14 = arith.constant 0 : index
    %c0_15 = arith.constant 0 : index
    %23 = vector.load %arg5[%c0_14, %c0_15] : memref<8x128xf32, #tpu.memory_space<vmem>>, vector<8x128xf32>
    tpu.vector_store %arg5[%c0_14, %c0_15], %22 {strides = array<i32>} : memref<8x128xf32, #tpu.memory_space<vmem>>, vector<8x128xf32>,
    return
  }
  func.func @transform_0(%arg0: i32, %arg1: i32) -> (i32, i32) {
    %c1_i32 = arith.constant 1 : i32
    %0 = arith.muli %arg0, %c1_i32 : i32
    %1 = arith.addi %0, %arg1 : i32
    %c0_i32 = arith.constant 0 : i32
    %c0_i32_0 = arith.constant 0 : i32
    return %1, %c0_i32 : i32, i32
  }
  func.func @transform_1(%arg0: i32, %arg1: i32) -> (i32, i32) {
    %c1_i32 = arith.constant 1 : i32
    %0 = arith.muli %arg0, %c1_i32 : i32
    %1 = arith.addi %0, %arg1 : i32
    %c0_i32 = arith.constant 0 : i32
    %c0_i32_0 = arith.constant 0 : i32
    return %1, %c0_i32 : i32, i32
  }
  func.func @transform_2(%arg0: i32, %arg1: i32) -> (i32, i32) {
    %c0_i32 = arith.constant 0 : i32
    %c0_i32_0 = arith.constant 0 : i32
    return %arg0, %c0_i32 : i32, i32
  }
  func.func @transform_3(%arg0: i32, %arg1: i32) -> (i32, i32) {
    %c0_i32 = arith.constant 0 : i32
    %c0_i32_0 = arith.constant 0 : i32
    return %arg0, %c0_i32 : i32, i32
  }
}

</mosaic_0001>

<llo_original>
// kernel: tpu_custom_call.1
$region0: #{tpu_custom_call.1}
  #allocation0 [shape = 'u32[]', space=smem, size = 0x4, offset = 0x4, fixed_abs, tag = 'smem constant byte address 0x4 - core index']
  #allocation1 [shape = 'u32[72,128]{1,0:T(1,128)}', space=vmem, size = 0x9000, scoped, tag = 'internal scratch']
  %s0 = inlined_call_operand.hbm [shape: f32[32,128], index: 0, kind: input, shape index: {}]
  %s1 = inlined_call_operand.hbm [shape: f32[32,128], index: 1, kind: input, shape index: {}]
  %s2 = inlined_call_operand.hbm [shape: f32[8,128], index: 2, kind: output, shape index: {0}]
  %s3 = inlined_call_operand.hbm [shape: f32[8,128], index: 3, kind: output, shape index: {1}]
  %4 = xla_tuple %s2, %s3
  %s5 = sld [smem:[#allocation0]]
  $region38: #{tpu_custom_call.1} parent=0
    _
  %s7 = ssub.s32 1, %s5
  %s8 = scalar_select 0, %s7, %s5
  $region1: #{tpu_custom_call.1} parent=0
    #allocation2 [shape = 'u8[16384]{0}', space=vmem, size = 0x4000, scoped, tag = 'input window, operand 0, single buffered']
    #allocation3 [shape = 's32[1]{0}', space=sflag, size = 0x4, scoped, tag = 'scoped memory for tpu_custom_call.1']
    #allocation4 [shape = 's32[1]{0}', space=sflag, size = 0x4, scoped, tag = 'scoped memory for tpu_custom_call.1']
    #allocation5 [shape = 'u8[16384]{0}', space=vmem, size = 0x4000, scoped, tag = 'input window, operand 1, single buffered']
    #allocation6 [shape = 's32[1]{0}', space=sflag, size = 0x4, scoped, tag = 'scoped memory for tpu_custom_call.1']
    #allocation7 [shape = 'u8[4096]{0}', space=vmem, size = 0x1000, scoped, tag = 'output window, operand 0, single buffered']
    #allocation8 [shape = 'u8[4096]{0}', space=vmem, size = 0x1000, scoped, tag = 'output window, operand 1, single buffered']
    #allocation9 [shape = 's32[1]{0}', space=sflag, size = 0x4, scoped, tag = 'scoped memory for tpu_custom_call.1']
    %9 = vsyncpa [#allocation3], 0
    %10 = vsyncpa [#allocation6], 0
    %11 = vsyncpa [#allocation4], 0
    %12 = vsyncpa [#allocation9], 0
    // Predicated region
    $region2: #{tpu_custom_call.1} parent=1 // pred_check
      _
    $region3: #{tpu_custom_call.1} parent=1 // pred_check_branch
      %14 = sbr.rel (0) target = $region5
    $region4: #{tpu_custom_call.1} parent=1 // pred_region
      %s15 = sadd.s32 0, 0
      %s16 = smul.u32 4, %s15
      %18 = vsyncadd [#allocation3], 0
      %s19 = smul.addr %s16, 8
      %s20 = scalar_lea.hbm %s0, %s19
      %s21 = sshll.u32 %s20, 4
      %s22 = int_to_ptr.hbm [resolvable:$true] %s21
      %s23 = sshll.u32 [#allocation2], 4
      %s24 = int_to_ptr.vmem [resolvable:$true] %s23
      %29 = dma.hbm_to_vmem [thread:$0]  %s22, 512, %s24, [#allocation3], 128, 128, 8
    $region5: #{tpu_custom_call.1} parent=1 // pred_fallthru
      _
    // Predicated region
    $region6: #{tpu_custom_call.1} parent=1 // pred_check
      _
    $region7: #{tpu_custom_call.1} parent=1 // pred_check_branch
      %31 = sbr.rel (0) target = $region9
    $region8: #{tpu_custom_call.1} parent=1 // pred_region
      %s32 = sadd.s32 0, 0
      %s33 = smul.u32 4, %s32
      %35 = vsyncadd [#allocation6], 0
      %s36 = smul.addr %s33, 8
      %s37 = scalar_lea.hbm %s1, %s36
      %s38 = sshll.u32 %s37, 4
      %s39 = int_to_ptr.hbm [resolvable:$true] %s38
      %s40 = sshll.u32 [#allocation5], 4
      %s41 = int_to_ptr.vmem [resolvable:$true] %s40
      %46 = dma.hbm_to_vmem [thread:$0]  %s39, 512, %s41, [#allocation6], 128, 128, 8
    $region9: #{tpu_custom_call.1} parent=1 // pred_fallthru
      _
    // Predicated region
    $region10: #{tpu_custom_call.1} parent=1 // pred_check
      _
    $region11: #{tpu_custom_call.1} parent=1 // pred_check_branch
      %48 = sbr.rel (0) target = $region13
    $region12: #{tpu_custom_call.1} parent=1 // pred_region
      %50 = dma.done [#allocation3], 512
    $region13: #{tpu_custom_call.1} parent=1 // pred_fallthru
      _
    // Predicated region
    $region14: #{tpu_custom_call.1} parent=1 // pred_check
      _
    $region15: #{tpu_custom_call.1} parent=1 // pred_check_branch
      %52 = sbr.rel (0) target = $region17
    $region16: #{tpu_custom_call.1} parent=1 // pred_region
      %54 = dma.done [#allocation6], 512
    $region17: #{tpu_custom_call.1} parent=1 // pred_fallthru
      _
    %s55 = sadd.s32 0, 0
    %s56 = smul.u32 4, %s55
    %s57 = sadd.s32 0, 0
    %s58 = smul.u32 4, %s57
    %p59 = scmp.eq.s32.totalorder 0, 0
    // Predicated region
    $region18: #{tpu_custom_call.1} parent=1 // pred_check
      %p60 = pneg %p59
    $region19: #{tpu_custom_call.1} parent=1 // pred_check_branch
      %62 = sbr.rel (%p60) target = $region21
    $region20: #{tpu_custom_call.1} parent=1 // pred_region
      %63 = vst [vmem:[#allocation7] sm:$0xff] 0.0
      %64 = vst [vmem:[#allocation8] sm:$0xff] 0.0
    $region21: #{tpu_custom_call.1} parent=1 // pred_fallthru
      _
    %v65 = vld [vmem:[#allocation2] sm:$0xff]
    %v66 = vld [vmem:[#allocation2 + $0x8] sm:$0xff]
    %v67 = vld [vmem:[#allocation2 + $0x10] sm:$0xff]
    %v68 = vld [vmem:[#allocation2 + $0x18] sm:$0xff]
    %v69 = vld [vmem:[#allocation5] sm:$0xff]
    %v70 = vld [vmem:[#allocation5 + $0x8] sm:$0xff]
    %v71 = vld [vmem:[#allocation5 + $0x10] sm:$0xff]
    %v72 = vld [vmem:[#allocation5 + $0x18] sm:$0xff]
    %v73 = vmul.f32 %v65, 0.5
    %v74 = vmul.f32 %v66, 0.5
    %v75 = vmul.f32 %v67, 0.5
    %v76 = vmul.f32 %v68, 0.5
    %v77 = vtanh.pop %v73
    %v78 = vtanh.pop %v74
    %v79 = vtanh.pop %v75
    %v80 = vtanh.pop %v76
    %v81 = vmul.f32 %v77, 0.5
    %v82 = vmul.f32 %v78, 0.5
    %v83 = vmul.f32 %v79, 0.5
    %v84 = vmul.f32 %v80, 0.5
    %v85 = vadd.f32 %v81, 0.5
    %v86 = vadd.f32 %v82, 0.5
    %v87 = vadd.f32 %v83, 0.5
    %v88 = vadd.f32 %v84, 0.5
    %v89 = vmul.f32 %v85, %v69
    %v90 = vmul.f32 %v86, %v70
    %v91 = vmul.f32 %v87, %v71
    %v92 = vmul.f32 %v88, %v72
    %v93 = vadd.f32 %v85, %v69
    %v94 = vadd.f32 %v86, %v70
    %v95 = vadd.f32 %v87, %v71
    %v96 = vadd.f32 %v88, %v72
    %v97 = vld [vmem:[#allocation7] sm:$0xff]
    %v98 = vadd.f32 %v89, %v90
    %v99 = vadd.f32 %v98, %v91
    %v100 = vadd.f32 %v99, %v92
    %v101 = vadd.f32 %v97, %v100
    %102 = vst [vmem:[#allocation7] sm:$0xff] %v101
    %v103 = vld [vmem:[#allocation8] sm:$0xff]
    %v104 = vadd.f32 %v93, %v94
    %v105 = vadd.f32 %v104, %v95
    %v106 = vadd.f32 %v105, %v96
    %v107 = vadd.f32 %v103, %v106
    %108 = vst [vmem:[#allocation8] sm:$0xff] %v107
    // Predicated region
    $region22: #{tpu_custom_call.1} parent=1 // pred_check
      _
    $region23: #{tpu_custom_call.1} parent=1 // pred_check_branch
      %110 = sbr.rel (0) target = $region25
    $region24: #{tpu_custom_call.1} parent=1 // pred_region
      %112 = vsyncadd [#allocation4], 0
      %s114 = sshll.u32 [#allocation7], 4
      %s115 = int_to_ptr.vmem [resolvable:$true] %s114
      %s116 = sshll.u32 %s2, 4
      %s117 = int_to_ptr.hbm [resolvable:$true] %s116
      %119 = dma.vmem_to_hbm [thread:$0]  %s115, 128, %s117, [#allocation4]
    $region25: #{tpu_custom_call.1} parent=1 // pred_fallthru
      _
    // Predicated region
    $region26: #{tpu_custom_call.1} parent=1 // pred_check
      _
    $region27: #{tpu_custom_call.1} parent=1 // pred_check_branch
      %121 = sbr.rel (0) target = $region29
    $region28: #{tpu_custom_call.1} parent=1 // pred_region
      %123 = vsyncadd [#allocation9], 0
      %s125 = sshll.u32 [#allocation8], 4
      %s126 = int_to_ptr.vmem [resolvable:$true] %s125
      %s127 = sshll.u32 %s3, 4
      %s128 = int_to_ptr.hbm [resolvable:$true] %s127
      %130 = dma.vmem_to_hbm [thread:$0]  %s126, 128, %s128, [#allocation9]
    $region29: #{tpu_custom_call.1} parent=1 // pred_fallthru
      _
    // Predicated region
    $region30: #{tpu_custom_call.1} parent=1 // pred_check
      _
    $region31: #{tpu_custom_call.1} parent=1 // pred_check_branch
      %132 = sbr.rel (0) target = $region33
    $region32: #{tpu_custom_call.1} parent=1 // pred_region
      %134 = dma.done [#allocation4], 128
    $region33: #{tpu_custom_call.1} parent=1 // pred_fallthru
      _
    // Predicated region
    $region34: #{tpu_custom_call.1} parent=1 // pred_check
      _
    $region35: #{tpu_custom_call.1} parent=1 // pred_check_branch
      %136 = sbr.rel (0) target = $region37
    $region36: #{tpu_custom_call.1} parent=1 // pred_region
      %138 = dma.done [#allocation9], 128
    $region37: #{tpu_custom_call.1} parent=1 // pred_fallthru
      _
    %139 = vsyncpa [#allocation3], 1
    %140 = vsyncpa [#allocation6], 1
    %141 = vsyncpa [#allocation4], 1
    %142 = vsyncpa [#allocation9], 1

</llo_original>
